<compile_context>
chip_gen: v7x
topology: tpu7x:2x2x1
jax: 0.10.0
libtpu: 0.0.40
codegen_flags: <defaults>
</compile_context>

<pallas_src>
import jax
import jax.numpy as jnp
from jax.experimental import pallas as pl
from jax.experimental.pallas import tpu as pltpu


def _round_up(v, m):
    return (v + m - 1) // m * m


def make_epsilon_kernel(n_hidden_layers, h_pad):
    """Builds the fused MLP kernel for a fixed number of hidden layers.

    Ref order:
      xt_ref   : (tile_b, nfeat + Tdim)            [x | t_emb] concatenated
      w_xt_ref : (nfeat + Tdim, 2*h_pad)           block-diagonal fused weight
      b_xt_ref : (1, 2*h_pad)                      [b_in | b_t] (padded)
      (w_h, b_h) * n_hidden_layers                 padded to (h_pad, h_pad)
      w_out_ref: (h_pad, n_pad), b_out_ref: (1, n_pad)
      out_ref  : (tile_b, n_pad)                   lane-dense, sliced in wrapper
    """

    def kernel(xt_ref, w_xt_ref, b_xt_ref, *rest):
        hidden_refs = rest[: 2 * n_hidden_layers]
        w_out_ref, b_out_ref, out_ref = rest[2 * n_hidden_layers:]

        relu = lambda v: jnp.maximum(v, 0.0)

        # Fused input + time projection: one full-lane-width (N = 2*h_pad) matmul.
        y = relu(
            jnp.dot(xt_ref[...], w_xt_ref[...], preferred_element_type=jnp.float32)
            + b_xt_ref[...]
        )
        # h = relu(x @ W_in + b_in) + relu(t_emb @ W_t + b_t)
        # (slice at a 128-lane boundary -> no layout shuffles)
        h = y[:, :h_pad] + y[:, h_pad:]

        # hidden_layers: (nlayers - 1) x [Linear + ReLU]
        for l in range(n_hidden_layers):
            w = hidden_refs[2 * l][...]
            b = hidden_refs[2 * l + 1][...]
            h = relu(
                jnp.dot(h.astype(w.dtype), w, preferred_element_type=jnp.float32) + b
            )

        # output_layer: Linear (no activation), lane-dense store
        out_ref[...] = (
            jnp.dot(h.astype(w_out_ref.dtype), w_out_ref[...],
                    preferred_element_type=jnp.float32)
            + b_out_ref[...]
        ).astype(out_ref.dtype)

    return kernel


def epsilon_forward(x, t_emb, params, *, compute_dtype=jnp.float32,
                    max_tile_b=512, vmem_budget_bytes=24 * 1024 * 1024):
    """Pallas forward pass. `params` is the flat list of (W, b) in layer order:
    [w_in, b_in, w_t, b_t, (w_h, b_h)*(nlayers-1), w_out, b_out], W as (in, out).
    """
    B, nfeat = x.shape
    tdim = t_emb.shape[1]
    n_hidden_layers = (len(params) - 6) // 2  # 6 = in(2) + time(2) + out(2)

    w_in, b_in, w_t, b_t = params[0], params[1], params[2], params[3]
    w_out, b_out = params[-2], params[-1]
    hidden = w_in.shape[1]
    ntargets = w_out.shape[1]

    h_pad = _round_up(hidden, 128)       # full 128-lane vregs everywhere
    n_pad = _round_up(ntargets, 128)     # lane-dense output stores
    k_in = nfeat + tdim

    # ---- Build padded / fused parameters (zero padding is exact for ReLU MLP).
    w_xt = jnp.zeros((k_in, 2 * h_pad), compute_dtype)
    w_xt = w_xt.at[:nfeat, :hidden].set(w_in.astype(compute_dtype))
    w_xt = w_xt.at[nfeat:, h_pad:h_pad + hidden].set(w_t.astype(compute_dtype))
    b_xt = jnp.zeros((1, 2 * h_pad), jnp.float32)
    b_xt = b_xt.at[:, :hidden].set(b_in.astype(jnp.float32))
    b_xt = b_xt.at[:, h_pad:h_pad + hidden].set(b_t.astype(jnp.float32))

    fused_params = [w_xt, b_xt]
    for l in range(n_hidden_layers):
        w = params[4 + 2 * l]
        b = params[5 + 2 * l]
        wp = jnp.zeros((h_pad, h_pad), compute_dtype).at[:hidden, :hidden].set(
            w.astype(compute_dtype))
        bp = jnp.zeros((1, h_pad), jnp.float32).at[:, :hidden].set(
            b.astype(jnp.float32))
        fused_params += [wp, bp]
    wop = jnp.zeros((h_pad, n_pad), compute_dtype).at[:hidden, :ntargets].set(
        w_out.astype(compute_dtype))
    bop = jnp.zeros((1, n_pad), jnp.float32).at[:, :ntargets].set(
        b_out.astype(jnp.float32))
    fused_params += [wop, bop]

    # ---- Batch tiling: large tile, capped by a conservative VMEM budget so the
    # kernel fits v5e's 16 MiB default scoped VMEM and v7x's 64 MiB physical VMEM.
    act_itemsize = jnp.dtype(compute_dtype).itemsize
    weight_bytes = sum(int(p.size) * p.dtype.itemsize for p in fused_params)
    row_bytes = (
        2 * k_in * act_itemsize            # double-buffered [x|t] input tile
        + 2 * n_pad * 4                    # double-buffered output tile
        + (3 * h_pad + n_pad) * 4          # live f32 intermediates (rough)
    )
    avail = max(vmem_budget_bytes - 2 * weight_bytes, 8 * row_bytes)
    cap = max(8, (avail // row_bytes) // 8 * 8)
    tile_b = int(min(_round_up(B, 8), max_tile_b, cap))

    b_pad = _round_up(B, tile_b)
    xt = jnp.concatenate([x, t_emb], axis=1).astype(compute_dtype)
    if b_pad != B:
        xt = jnp.pad(xt, ((0, b_pad - B), (0, 0)))
    grid = (b_pad // tile_b,)

    xt_spec = pl.BlockSpec((tile_b, k_in), lambda i: (i, 0))
    # All fused params are 2-D full-array blocks (no late-binding lambda bug).
    param_specs = [pl.BlockSpec(p.shape, lambda i: (0, 0)) for p in fused_params]
    out_spec = pl.BlockSpec((tile_b, n_pad), lambda i: (i, 0))

    kernel = make_epsilon_kernel(n_hidden_layers, h_pad)

    out = pl.pallas_call(
        kernel,
        out_shape=jax.ShapeDtypeStruct((b_pad, n_pad), jnp.float32),
        grid_spec=pltpu.PrefetchScalarGridSpec(
            num_scalar_prefetch=0,
            grid=grid,
            in_specs=[xt_spec] + param_specs,
            out_specs=out_spec,
        ),
        compiler_params=pltpu.CompilerParams(
            dimension_semantics=("parallel",),   # megacore sharding on v7x
            vmem_limit_bytes=32 * 1024 * 1024,
        ),
    )(xt, *fused_params)

    # Strip batch and lane padding.
    return out[:B, :ntargets]


def init_params(key, nfeatures, ntargets, nlayers, hidden_size, time_embedding_dim):
    """Deterministic synthetic parameters. Weights stored as (in, out)."""
    params = []

    def linear(k, fan_in, fan_out):
        kw, kb = jax.random.split(k)
        bound = 1.0 / jnp.sqrt(fan_in)
        w = jax.random.uniform(kw, (fan_in, fan_out), jnp.float32, -bound, bound)
        b = jax.random.uniform(kb, (1, fan_out), jnp.float32, -bound, bound)
        return w, b

    keys = jax.random.split(key, 3 + (nlayers - 1))
    params.extend(linear(keys[0], nfeatures, hidden_size))          # input_layer
    params.extend(linear(keys[1], time_embedding_dim, hidden_size)) # time_mlp
    for l in range(nlayers - 1):                                    # hidden_layers
        params.extend(linear(keys[2 + l], hidden_size, hidden_size))
    params.extend(linear(keys[-1], hidden_size, ntargets))          # output_layer
    return params


def epsilon_reference(x, t_emb, params):
    """Pure-JAX reference of the PyTorch forward (activation = ReLU)."""
    n_hidden_layers = (len(params) - 6) // 2
    relu = lambda v: jnp.maximum(v, 0.0)
    w_in, b_in, w_t, b_t = params[0], params[1], params[2], params[3]
    h = relu(x @ w_in + b_in) + relu(t_emb @ w_t + b_t)
    for l in range(n_hidden_layers):
        w = params[4 + 2 * l]
        b = params[5 + 2 * l]
        h = relu(h @ w + b)
    w_out, b_out = params[-2], params[-1]
    return h @ w_out + b_out


# TODO(synk): only activation='ReLU' (the module default) is implemented; other
# choices (LeakyReLU/PReLU/ELU/SELU/CELU) would need a different elementwise op
# and, for padding correctness, act(0)=0 handling.

if __name__ == "__main__":
    # Small shapes consistent with the module's __init__.
    batch = 16
    nfeatures = 32
    ntargets = 16
    nlayers = 3            # -> 2 hidden (H,H) layers
    hidden_size = 64
    time_embedding_dim = 128

    key = jax.random.PRNGKey(0)
    kx, kt, kp = jax.random.split(key, 3)

    x = jax.random.normal(kx, (batch, nfeatures), jnp.float32)
    t_emb = jax.random.normal(kt, (batch, time_embedding_dim), jnp.float32)
    params = init_params(kp, nfeatures, ntargets, nlayers, hidden_size,
                         time_embedding_dim)

    out = epsilon_forward(x, t_emb, params)
    out = jax.block_until_ready(out)

    ref = epsilon_reference(x, t_emb, params)
    assert out.shape == (batch, ntargets)
    assert jnp.allclose(out, ref, atol=1e-4, rtol=1e-4), "mismatch vs reference"

    print("KERNEL_OK")
</pallas_src>

<mosaic_0001>
module attributes {stable_mosaic.version = 11 : i64} {
  func.func @kernel(%arg0: i32, %arg1: memref<16x160xf32, #tpu.memory_space<vmem>>, %arg2: memref<160x256xf32, #tpu.memory_space<vmem>>, %arg3: memref<1x256xf32, #tpu.memory_space<vmem>>, %arg4: memref<128x128xf32, #tpu.memory_space<vmem>>, %arg5: memref<1x128xf32, #tpu.memory_space<vmem>>, %arg6: memref<128x128xf32, #tpu.memory_space<vmem>>, %arg7: memref<1x128xf32, #tpu.memory_space<vmem>>, %arg8: memref<128x128xf32, #tpu.memory_space<vmem>>, %arg9: memref<1x128xf32, #tpu.memory_space<vmem>>, %arg10: memref<16x128xf32, #tpu.memory_space<vmem>>) attributes {dimension_semantics = [#tpu.dimension_semantics<parallel>], iteration_bounds = array<i64: 1>, scalar_prefetch = 0 : i64, scratch_operands = 0 : i64, tpu.core_type = #tpu.core_type<tc>, window_params = [{transform_indices = @transform_0, window_bounds = array<i64: 16, 160>}, {pipeline_mode = #tpu.pipeline_mode<synchronous>, transform_indices = @transform_1, window_bounds = array<i64: 160, 256>}, {pipeline_mode = #tpu.pipeline_mode<synchronous>, transform_indices = @transform_2, window_bounds = array<i64: 1, 256>}, {pipeline_mode = #tpu.pipeline_mode<synchronous>, transform_indices = @transform_3, window_bounds = array<i64: 128, 128>}, {pipeline_mode = #tpu.pipeline_mode<synchronous>, transform_indices = @transform_4, window_bounds = array<i64: 1, 128>}, {pipeline_mode = #tpu.pipeline_mode<synchronous>, transform_indices = @transform_5, window_bounds = array<i64: 128, 128>}, {pipeline_mode = #tpu.pipeline_mode<synchronous>, transform_indices = @transform_6, window_bounds = array<i64: 1, 128>}, {pipeline_mode = #tpu.pipeline_mode<synchronous>, transform_indices = @transform_7, window_bounds = array<i64: 128, 128>}, {pipeline_mode = #tpu.pipeline_mode<synchronous>, transform_indices = @transform_8, window_bounds = array<i64: 1, 128>}, {transform_indices = @transform_9, window_bounds = array<i64: 16, 128>}]} {
    %c0 = arith.constant 0 : index
    %c0_0 = arith.constant 0 : index
    %0 = vector.load %arg1[%c0, %c0_0] : memref<16x160xf32, #tpu.memory_space<vmem>>, vector<16x160xf32>
    %c0_1 = arith.constant 0 : index
    %c0_2 = arith.constant 0 : index
    %1 = vector.load %arg2[%c0_1, %c0_2] : memref<160x256xf32, #tpu.memory_space<vmem>>, vector<160x256xf32>
    %cst = arith.constant dense<0.000000e+00> : vector<16x256xf32>
    %2 = tpu.matmul %0, %1, %cst {dimension_numbers = #tpu.dot_dimension_numbers<[1], [0], [0], [1], [0, 0, 1, 1], [], []>} : vector<16x160xf32>, vector<160x256xf32>, vector<16x256xf32> -> vector<16x256xf32>
    %c0_3 = arith.constant 0 : index
    %c0_4 = arith.constant 0 : index
    %3 = vector.load %arg3[%c0_3, %c0_4] : memref<1x256xf32, #tpu.memory_space<vmem>>, vector<1x256xf32>
    %4 = vector.broadcast %3 : vector<1x256xf32> to vector<16x256xf32>
    %5 = arith.addf %2, %4 : vector<16x256xf32>
    %cst_5 = arith.constant 0.000000e+00 : f32
    %6 = vector.broadcast %cst_5 : f32 to vector<16x256xf32>
    %7 = arith.maximumf %5, %6 : vector<16x256xf32>
    %8 = vector.extract_strided_slice %7 {offsets = [0, 0], sizes = [16, 128], strides = [1, 1]} : vector<16x256xf32> to vector<16x128xf32>
    %9 = vector.extract_strided_slice %7 {offsets = [0, 128], sizes = [16, 128], strides = [1, 1]} : vector<16x256xf32> to vector<16x128xf32>
    %10 = arith.addf %8, %9 : vector<16x128xf32>
    %c0_6 = arith.constant 0 : index
    %c0_7 = arith.constant 0 : index
    %11 = vector.load %arg4[%c0_6, %c0_7] : memref<128x128xf32, #tpu.memory_space<vmem>>, vector<128x128xf32>
    %c0_8 = arith.constant 0 : index
    %c0_9 = arith.constant 0 : index
    %12 = vector.load %arg5[%c0_8, %c0_9] : memref<1x128xf32, #tpu.memory_space<vmem>>, vector<1x128xf32>
    %cst_10 = arith.constant dense<0.000000e+00> : vector<16x128xf32>
    %13 = tpu.matmul %10, %11, %cst_10 {dimension_numbers = #tpu.dot_dimension_numbers<[1], [0], [0], [1], [0, 0, 1, 1], [], []>} : vector<16x128xf32>, vector<128x128xf32>, vector<16x128xf32> -> vector<16x128xf32>
    %14 = vector.broadcast %12 : vector<1x128xf32> to vector<16x128xf32>
    %15 = arith.addf %13, %14 : vector<16x128xf32>
    %cst_11 = arith.constant 0.000000e+00 : f32
    %16 = vector.broadcast %cst_11 : f32 to vector<16x128xf32>
    %17 = arith.maximumf %15, %16 : vector<16x128xf32>
    %c0_12 = arith.constant 0 : index
    %c0_13 = arith.constant 0 : index
    %18 = vector.load %arg6[%c0_12, %c0_13] : memref<128x128xf32, #tpu.memory_space<vmem>>, vector<128x128xf32>
    %c0_14 = arith.constant 0 : index
    %c0_15 = arith.constant 0 : index
    %19 = vector.load %arg7[%c0_14, %c0_15] : memref<1x128xf32, #tpu.memory_space<vmem>>, vector<1x128xf32>
    %cst_16 = arith.constant dense<0.000000e+00> : vector<16x128xf32>
    %20 = tpu.matmul %17, %18, %cst_16 {dimension_numbers = #tpu.dot_dimension_numbers<[1], [0], [0], [1], [0, 0, 1, 1], [], []>} : vector<16x128xf32>, vector<128x128xf32>, vector<16x128xf32> -> vector<16x128xf32>
    %21 = vector.broadcast %19 : vector<1x128xf32> to vector<16x128xf32>
    %22 = arith.addf %20, %21 : vector<16x128xf32>
    %cst_17 = arith.constant 0.000000e+00 : f32
    %23 = vector.broadcast %cst_17 : f32 to vector<16x128xf32>
    %24 = arith.maximumf %22, %23 : vector<16x128xf32>
    %c0_18 = arith.constant 0 : index
    %c0_19 = arith.constant 0 : index
    %25 = vector.load %arg8[%c0_18, %c0_19] : memref<128x128xf32, #tpu.memory_space<vmem>>, vector<128x128xf32>
    %cst_20 = arith.constant dense<0.000000e+00> : vector<16x128xf32>
    %26 = tpu.matmul %24, %25, %cst_20 {dimension_numbers = #tpu.dot_dimension_numbers<[1], [0], [0], [1], [0, 0, 1, 1], [], []>} : vector<16x128xf32>, vector<128x128xf32>, vector<16x128xf32> -> vector<16x128xf32>
    %c0_21 = arith.constant 0 : index
    %c0_22 = arith.constant 0 : index
    %27 = vector.load %arg9[%c0_21, %c0_22] : memref<1x128xf32, #tpu.memory_space<vmem>>, vector<1x128xf32>
    %28 = vector.broadcast %27 : vector<1x128xf32> to vector<16x128xf32>
    %29 = arith.addf %26, %28 : vector<16x128xf32>
    %c0_23 = arith.constant 0 : index
    %c0_24 = arith.constant 0 : index
    %30 = vector.load %arg10[%c0_23, %c0_24] : memref<16x128xf32, #tpu.memory_space<vmem>>, vector<16x128xf32>
    tpu.vector_store %arg10[%c0_23, %c0_24], %29 {strides = array<i32>} : memref<16x128xf32, #tpu.memory_space<vmem>>, vector<16x128xf32>,
    return
  }
  func.func @transform_0(%arg0: i32) -> (i32, i32) {
    %c0_i32 = arith.constant 0 : i32
    %c0_i32_0 = arith.constant 0 : i32
    return %arg0, %c0_i32 : i32, i32
  }
  func.func @transform_1(%arg0: i32) -> (i32, i32) {
    %c0_i32 = arith.constant 0 : i32
    %c0_i32_0 = arith.constant 0 : i32
    %c0_i32_1 = arith.constant 0 : i32
    return %c0_i32, %c0_i32_0 : i32, i32
  }
  func.func @transform_2(%arg0: i32) -> (i32, i32) {
    %c0_i32 = arith.constant 0 : i32
    %c0_i32_0 = arith.constant 0 : i32
    %c0_i32_1 = arith.constant 0 : i32
    return %c0_i32, %c0_i32_0 : i32, i32
  }
  func.func @transform_3(%arg0: i32) -> (i32, i32) {
    %c0_i32 = arith.constant 0 : i32
    %c0_i32_0 = arith.constant 0 : i32
    %c0_i32_1 = arith.constant 0 : i32
    return %c0_i32, %c0_i32_0 : i32, i32
  }
  func.func @transform_4(%arg0: i32) -> (i32, i32) {
    %c0_i32 = arith.constant 0 : i32
    %c0_i32_0 = arith.constant 0 : i32
    %c0_i32_1 = arith.constant 0 : i32
    return %c0_i32, %c0_i32_0 : i32, i32
  }
  func.func @transform_5(%arg0: i32) -> (i32, i32) {
    %c0_i32 = arith.constant 0 : i32
    %c0_i32_0 = arith.constant 0 : i32
    %c0_i32_1 = arith.constant 0 : i32
    return %c0_i32, %c0_i32_0 : i32, i32
  }
  func.func @transform_6(%arg0: i32) -> (i32, i32) {
    %c0_i32 = arith.constant 0 : i32
    %c0_i32_0 = arith.constant 0 : i32
    %c0_i32_1 = arith.constant 0 : i32
    return %c0_i32, %c0_i32_0 : i32, i32
  }
  func.func @transform_7(%arg0: i32) -> (i32, i32) {
    %c0_i32 = arith.constant 0 : i32
    %c0_i32_0 = arith.constant 0 : i32
    %c0_i32_1 = arith.constant 0 : i32
    return %c0_i32, %c0_i32_0 : i32, i32
  }
  func.func @transform_8(%arg0: i32) -> (i32, i32) {
    %c0_i32 = arith.constant 0 : i32
    %c0_i32_0 = arith.constant 0 : i32
    %c0_i32_1 = arith.constant 0 : i32
    return %c0_i32, %c0_i32_0 : i32, i32
  }
  func.func @transform_9(%arg0: i32) -> (i32, i32) {
    %c0_i32 = arith.constant 0 : i32
    %c0_i32_0 = arith.constant 0 : i32
    return %arg0, %c0_i32 : i32, i32
  }
}

</mosaic_0001>

<llo_original>
// kernel: tpu_custom_call.1
$region0: #{tpu_custom_call.1}
  #allocation0 [shape = 'u32[]', space=smem, size = 0x4, offset = 0x4, fixed_abs, tag = 'smem constant byte address 0x4 - core index']
  #allocation1 [shape = 'u32[144,128]{1,0:T(1,128)}', space=vmem, size = 0x12000, scoped, tag = 'internal scratch']
  %s0 = inlined_call_operand.hbm [shape: f32[16,160], index: 0, kind: input, shape index: {}]
  %s1 = inlined_call_operand.hbm [shape: f32[160,256], index: 1, kind: input, shape index: {}]
  %s2 = inlined_call_operand.vmem [shape: f32[1,256], index: 2, kind: input, shape index: {}]
  %s3 = inlined_call_operand.hbm [shape: f32[128,128], index: 3, kind: input, shape index: {}]
  %s4 = inlined_call_operand.vmem [shape: f32[1,128], index: 4, kind: input, shape index: {}]
  %s5 = inlined_call_operand.hbm [shape: f32[128,128], index: 5, kind: input, shape index: {}]
  %s6 = inlined_call_operand.vmem [shape: f32[1,128], index: 6, kind: input, shape index: {}]
  %s7 = inlined_call_operand.hbm [shape: f32[128,128], index: 7, kind: input, shape index: {}]
  %s8 = inlined_call_operand.vmem [shape: f32[1,128], index: 8, kind: input, shape index: {}]
  %s9 = inlined_call_operand.hbm [shape: f32[16,128], index: 9, kind: output, shape index: {}]
  %s10 = sld [smem:[#allocation0]]
  $region66: #{tpu_custom_call.1} parent=0
    _
  %s12 = ssub.s32 1, %s10
  %s13 = scalar_select 0, %s12, %s10
  $region1: #{tpu_custom_call.1} parent=0
    #allocation2 [shape = 'u8[16384]{0}', space=vmem, size = 0x4000, scoped, tag = 'input window, operand 0, single buffered']
    #allocation3 [shape = 's32[1]{0}', space=sflag, size = 0x4, scoped, tag = 'scoped memory for tpu_custom_call.1']
    #allocation4 [shape = 's32[1]{0}', space=sflag, size = 0x4, scoped, tag = 'scoped memory for tpu_custom_call.1']
    #allocation5 [shape = 'u8[163840]{0}', space=vmem, size = 0x28000, scoped, tag = 'input window, operand 1, single buffered']
    #allocation6 [shape = 's32[1]{0}', space=sflag, size = 0x4, scoped, tag = 'scoped memory for tpu_custom_call.1']
    #allocation7 [shape = 'u8[65536]{0}', space=vmem, size = 0x10000, scoped, tag = 'input window, operand 3, single buffered']
    #allocation8 [shape = 'u8[65536]{0}', space=vmem, size = 0x10000, scoped, tag = 'input window, operand 5, single buffered']
    #allocation9 [shape = 's32[1]{0}', space=sflag, size = 0x4, scoped, tag = 'scoped memory for tpu_custom_call.1']
    #allocation10 [shape = 'u8[65536]{0}', space=vmem, size = 0x10000, scoped, tag = 'input window, operand 7, single buffered']
    #allocation11 [shape = 'u8[8192]{0}', space=vmem, size = 0x2000, scoped, tag = 'output window, operand 0, single buffered']
    %14 = vsyncpa [#allocation3], 0
    %15 = vsyncpa [#allocation6], 0
    %16 = vsyncpa [#allocation9], 0
    %17 = vsyncpa [#allocation4], 0
    // Predicated region
    $region2: #{tpu_custom_call.1} parent=1 // pred_check
      _
    $region3: #{tpu_custom_call.1} parent=1 // pred_check_branch
      %19 = sbr.rel (0) target = $region5
    $region4: #{tpu_custom_call.1} parent=1 // pred_region
      %s21 = ssub.s32 512, 512
      %22 = vsyncadd [#allocation3], %s21
      %s23 = sshll.u32 [#allocation2], 4
      %s24 = int_to_ptr.vmem [resolvable:$true] %s23
      %29 = dma.hbm_to_vmem [thread:$0]  %s0, 512, %s24, [#allocation3], 256, 256, 16
    $region5: #{tpu_custom_call.1} parent=1 // pred_fallthru
      _
    // Predicated region
    $region6: #{tpu_custom_call.1} parent=1 // pred_check
      _
    $region7: #{tpu_custom_call.1} parent=1 // pred_check_branch
      %31 = sbr.rel (0) target = $region9
    $region8: #{tpu_custom_call.1} parent=1 // pred_region
      %s33 = ssub.s32 5120, 5120
      %34 = vsyncadd [#allocation6], %s33
      %s35 = sshll.u32 [#allocation5], 4
      %s36 = int_to_ptr.vmem [resolvable:$true] %s35
      %41 = dma.hbm_to_vmem [thread:$0]  %s1, 5120, %s36, [#allocation6], 256, 256, 16
    $region9: #{tpu_custom_call.1} parent=1 // pred_fallthru
      _
    // Predicated region
    $region10: #{tpu_custom_call.1} parent=1 // pred_check
      _
    $region11: #{tpu_custom_call.1} parent=1 // pred_check_branch
      %43 = sbr.rel (0) target = $region13
    $region12: #{tpu_custom_call.1} parent=1 // pred_region
      _
    $region13: #{tpu_custom_call.1} parent=1 // pred_fallthru
      _
    // Predicated region
    $region14: #{tpu_custom_call.1} parent=1 // pred_check
      _
    $region15: #{tpu_custom_call.1} parent=1 // pred_check_branch
      %45 = sbr.rel (0) target = $region17
    $region16: #{tpu_custom_call.1} parent=1 // pred_region
      %s47 = ssub.s32 2048, 2048
      %48 = vsyncadd [#allocation6], %s47
      %s49 = sshll.u32 [#allocation7], 4
      %s50 = int_to_ptr.vmem [resolvable:$true] %s49
      %55 = dma.hbm_to_vmem [thread:$0]  %s3, 2048, %s50, [#allocation6], 128, 128, 8
    $region17: #{tpu_custom_call.1} parent=1 // pred_fallthru
      _
    // Predicated region
    $region18: #{tpu_custom_call.1} parent=1 // pred_check
      _
    $region19: #{tpu_custom_call.1} parent=1 // pred_check_branch
      %57 = sbr.rel (0) target = $region21
    $region20: #{tpu_custom_call.1} parent=1 // pred_region
      _
    $region21: #{tpu_custom_call.1} parent=1 // pred_fallthru
      _
    // Predicated region
    $region22: #{tpu_custom_call.1} parent=1 // pred_check
      _
    $region23: #{tpu_custom_call.1} parent=1 // pred_check_branch
      %59 = sbr.rel (0) target = $region25
    $region24: #{tpu_custom_call.1} parent=1 // pred_region
      %s61 = ssub.s32 2048, 2048
      %62 = vsyncadd [#allocation9], %s61
      %s63 = sshll.u32 [#allocation8], 4
      %s64 = int_to_ptr.vmem [resolvable:$true] %s63
      %69 = dma.hbm_to_vmem [thread:$0]  %s5, 2048, %s64, [#allocation9], 128, 128, 8
    $region25: #{tpu_custom_call.1} parent=1 // pred_fallthru
      _
    // Predicated region
    $region26: #{tpu_custom_call.1} parent=1 // pred_check
      _
    $region27: #{tpu_custom_call.1} parent=1 // pred_check_branch
      %71 = sbr.rel (0) target = $region29
    $region28: #{tpu_custom_call.1} parent=1 // pred_region
      _
    $region29: #{tpu_custom_call.1} parent=1 // pred_fallthru
      _
    // Predicated region
    $region30: #{tpu_custom_call.1} parent=1 // pred_check
      _
    $region31: #{tpu_custom_call.1} parent=1 // pred_check_branch
      %73 = sbr.rel (0) target = $region33
    $region32: #{tpu_custom_call.1} parent=1 // pred_region
      %s75 = ssub.s32 2048, 2048
      %76 = vsyncadd [#allocation9], %s75
      %s77 = sshll.u32 [#allocation10], 4
      %s78 = int_to_ptr.vmem [resolvable:$true] %s77
      %83 = dma.hbm_to_vmem [thread:$0]  %s7, 2048, %s78, [#allocation9], 128, 128, 8
    $region33: #{tpu_custom_call.1} parent=1 // pred_fallthru
      _
    // Predicated region
    $region34: #{tpu_custom_call.1} parent=1 // pred_check
      _
    $region35: #{tpu_custom_call.1} parent=1 // pred_check_branch
      %85 = sbr.rel (0) target = $region37
    $region36: #{tpu_custom_call.1} parent=1 // pred_region
      _
    $region37: #{tpu_custom_call.1} parent=1 // pred_fallthru
      _
    // Predicated region
    $region38: #{tpu_custom_call.1} parent=1 // pred_check
      _
    $region39: #{tpu_custom_call.1} parent=1 // pred_check_branch
      %87 = sbr.rel (0) target = $region41
    $region40: #{tpu_custom_call.1} parent=1 // pred_region
      %88 = dma.done [#allocation3], 512
    $region41: #{tpu_custom_call.1} parent=1 // pred_fallthru
      _
    // Predicated region
    $region42: #{tpu_custom_call.1} parent=1 // pred_check
      _
    $region43: #{tpu_custom_call.1} parent=1 // pred_check_branch
      %90 = sbr.rel (0) target = $region45
    $region44: #{tpu_custom_call.1} parent=1 // pred_region
      %91 = dma.done [#allocation6], 5120
    $region45: #{tpu_custom_call.1} parent=1 // pred_fallthru
      _
    // Predicated region
    $region46: #{tpu_custom_call.1} parent=1 // pred_check
      _
    $region47: #{tpu_custom_call.1} parent=1 // pred_check_branch
      %93 = sbr.rel (0) target = $region49
    $region48: #{tpu_custom_call.1} parent=1 // pred_region
      %94 = dma.done [#allocation6], 2048
    $region49: #{tpu_custom_call.1} parent=1 // pred_fallthru
      _
    // Predicated region
    $region50: #{tpu_custom_call.1} parent=1 // pred_check
      _
    $region51: #{tpu_custom_call.1} parent=1 // pred_check_branch
      %96 = sbr.rel (0) target = $region53
    $region52: #{tpu_custom_call.1} parent=1 // pred_region
      %97 = dma.done [#allocation9], 2048
    $region53: #{tpu_custom_call.1} parent=1 // pred_fallthru
      _
    // Predicated region
    $region54: #{tpu_custom_call.1} parent=1 // pred_check
      _
    $region55: #{tpu_custom_call.1} parent=1 // pred_check_branch
      %99 = sbr.rel (0) target = $region57
    $region56: #{tpu_custom_call.1} parent=1 // pred_region
      %100 = dma.done [#allocation9], 2048
    $region57: #{tpu_custom_call.1} parent=1 // pred_fallthru
      _
    %v101 = vld [vmem:[#allocation2] sm:$0xff]
    %v102 = vld [vmem:[#allocation2 + $0x8] sm:$0xff]
    %v103 = vld [vmem:[#allocation2 + $0x10] sm:$0xff]
    %v104 = vld [vmem:[#allocation2 + $0x18] sm:$0xff]
    %v105 = vld [vmem:[#allocation5] sm:$0xff]
    %v106 = vld [vmem:[#allocation5 + $0x8] sm:$0xff]
    %v107 = vld [vmem:[#allocation5 + $0x10] sm:$0xff]
    %v108 = vld [vmem:[#allocation5 + $0x18] sm:$0xff]
    %v109 = vld [vmem:[#allocation5 + $0x20] sm:$0xff]
    %v110 = vld [vmem:[#allocation5 + $0x28] sm:$0xff]
    %v111 = vld [vmem:[#allocation5 + $0x30] sm:$0xff]
    %v112 = vld [vmem:[#allocation5 + $0x38] sm:$0xff]
    %v113 = vld [vmem:[#allocation5 + $0x40] sm:$0xff]
    %v114 = vld [vmem:[#allocation5 + $0x48] sm:$0xff]
    %v115 = vld [vmem:[#allocation5 + $0x50] sm:$0xff]
    %v116 = vld [vmem:[#allocation5 + $0x58] sm:$0xff]
    %v117 = vld [vmem:[#allocation5 + $0x60] sm:$0xff]
    %v118 = vld [vmem:[#allocation5 + $0x68] sm:$0xff]
    %v119 = vld [vmem:[#allocation5 + $0x70] sm:$0xff]
    %v120 = vld [vmem:[#allocation5 + $0x78] sm:$0xff]
    %v121 = vld [vmem:[#allocation5 + $0x80] sm:$0xff]
    %v122 = vld [vmem:[#allocation5 + $0x88] sm:$0xff]
    %v123 = vld [vmem:[#allocation5 + $0x90] sm:$0xff]
    %v124 = vld [vmem:[#allocation5 + $0x98] sm:$0xff]
    %v125 = vld [vmem:[#allocation5 + $0xa0] sm:$0xff]
    %v126 = vld [vmem:[#allocation5 + $0xa8] sm:$0xff]
    %v127 = vld [vmem:[#allocation5 + $0xb0] sm:$0xff]
    %v128 = vld [vmem:[#allocation5 + $0xb8] sm:$0xff]
    %v129 = vld [vmem:[#allocation5 + $0xc0] sm:$0xff]
    %v130 = vld [vmem:[#allocation5 + $0xc8] sm:$0xff]
    %v131 = vld [vmem:[#allocation5 + $0xd0] sm:$0xff]
    %v132 = vld [vmem:[#allocation5 + $0xd8] sm:$0xff]
    %v133 = vld [vmem:[#allocation5 + $0xe0] sm:$0xff]
    %v134 = vld [vmem:[#allocation5 + $0xe8] sm:$0xff]
    %v135 = vld [vmem:[#allocation5 + $0xf0] sm:$0xff]
    %v136 = vld [vmem:[#allocation5 + $0xf8] sm:$0xff]
    %v137 = vld [vmem:[#allocation5 + $0x100] sm:$0xff]
    %v138 = vld [vmem:[#allocation5 + $0x108] sm:$0xff]
    %v139 = vld [vmem:[#allocation5 + $0x110] sm:$0xff]
    %v140 = vld [vmem:[#allocation5 + $0x118] sm:$0xff]
    %v141 = vld [vmem:[#allocation5 + $0x120] sm:$0xff]
    %v142 = vld [vmem:[#allocation5 + $0x128] sm:$0xff]
    %v143 = vld [vmem:[#allocation5 + $0x130] sm:$0xff]
    %v144 = vld [vmem:[#allocation5 + $0x138] sm:$0xff]
    %v145 = vld [vmem:[%s2] sm:$0x3]
    %v147 = vlaneseq
    %v148 = vshrl.u32 %v147, 7
    %v149 = vsub.s32 0, %v148
    %v150 = vrot.slane %v145, %v149
    %v151 = vlaneseq
    %v152 = vshrl.u32 %v151, 7
    %v153 = vsub.s32 1, %v152
    %v154 = vrot.slane %v145, %v153
    %vm157 = vcmask 261120
    %v159 = vsel %vm157, %v102, 0
    %v162 = vsel %vm157, %v104, 0
    %164 = vmatprep.subr.mxu0 %v106
    %165 = vmatpush1.msra.mxu0 %v105
    %166 = vmatprep.subr.mxu0 %v108
    %167 = vmatpush1.msra.mxu0 %v107
    %168 = vmatprep.subr.mxu0 %v110
    %169 = vmatpush1.msra.mxu0 %v109
    %170 = vmatprep.subr.mxu0 %v112
    %171 = vmatpush1.msra.mxu0 %v111
    %172 = vmatprep.subr.mxu0 %v114
    %173 = vmatpush1.msra.mxu0 %v113
    %174 = vmatprep.subr.mxu0 %v116
    %175 = vmatpush1.msra.mxu0 %v115
    %176 = vmatprep.subr.mxu0 %v118
    %177 = vmatpush1.msra.mxu0 %v117
    %178 = vmatprep.subr.mxu0 %v120
    %179 = vmatpush1.msra.mxu0 %v119
    %180 = vmatprep.subr.mxu0 %v122
    %181 = vmatpush1.msra.mxu0 %v121
    %182 = vmatprep.subr.mxu0 %v124
    %183 = vmatpush1.msra.mxu0 %v123
    %184 = vmatprep.subr.mxu0 %v126
    %185 = vmatpush1.msra.mxu0 %v125
    %186 = vmatprep.subr.mxu0 %v128
    %187 = vmatpush1.msra.mxu0 %v127
    %188 = vmatprep.subr.mxu0 %v130
    %189 = vmatpush1.msra.mxu0 %v129
    %190 = vmatprep.subr.mxu0 %v132
    %191 = vmatpush1.msra.mxu0 %v131
    %192 = vmatprep.subr.mxu0 %v134
    %193 = vmatpush1.msra.mxu0 %v133
    %194 = vmatprep.subr.mxu0 %v136
    %195 = vmatpush1.msra.mxu0 %v135
    %196 = vmatprep.subr.mxu0 %v138
    %197 = vmatpush1.msra.mxu0 %v137
    %198 = vmatprep.subr.mxu0 %v140
    %199 = vmatpush1.msra.mxu0 %v139
    %200 = vmatprep.subr.mxu0 %v142
    %201 = vmatpush1.msra.mxu0 %v141
    %202 = vmatprep.subr.mxu0 %v144
    %203 = vmatpush1.msra.mxu0 %v143
    %204 = vmatprep.subr.mxu0 0.0
    %205 = vmatpush1.msra.mxu0 0.0
    %206 = vmatprep.subr.mxu0 0.0
    %207 = vmatpush1.msra.mxu0 0.0
    %208 = vmatprep.subr.mxu0 0.0
    %209 = vmatpush1.msra.mxu0 0.0
    %210 = vmatprep.subr.mxu0 0.0
    %211 = vmatpush1.msra.mxu0 0.0
    %212 = vmatprep.subr.mxu0 0.0
    %213 = vmatpush1.msra.mxu0 0.0
    %214 = vmatprep.subr.mxu0 0.0
    %215 = vmatpush1.msra.mxu0 0.0
    %216 = vmatprep.subr.mxu0 0.0
    %217 = vmatpush1.msra.mxu0 0.0
    %218 = vmatprep.subr.mxu0 0.0
    %219 = vmatpush1.msra.mxu0 0.0
    %220 = vmatprep.subr.mxu0 0.0
    %221 = vmatpush1.msra.mxu0 0.0
    %222 = vmatprep.subr.mxu0 0.0
    %223 = vmatpush1.msra.mxu0 0.0
    %224 = vmatprep.subr.mxu0 0.0
    %225 = vmatpush1.msra.mxu0 0.0
    %226 = vmatprep.subr.mxu0 0.0
    %227 = vmatpush1.msra.mxu0 0.0
    %228 = vmatprep.mubr.f32.mxu0 %v159
    %229 = vmatmul.mubr.f32.gmra.mrb[0].mxu0 %v101
    %v230 = vpop.f32.mrb[0].mxu0
    %v231 = vadd.f32 %v150, %v230
    %v232 = vpop.f32.mrb[0].mxu0
    %v233 = vadd.f32 %v154, %v232
    %234 = vmatprep.mubr.f32.mxu0 %v162
    %235 = vmatmul.mubr.f32.gmra.mrb[0].mxu0 %v103
    %v236 = vpop.f32.mrb[0].mxu0
    %v237 = vadd.f32 %v150, %v236
    %v238 = vpop.f32.mrb[0].mxu0
    %v239 = vadd.f32 %v154, %v238
    %240 = vdwg.mxu0
    %v241 = vmax.f32 %v231, 0.0
    %v242 = vmax.f32 %v233, 0.0
    %v243 = vmax.f32 %v237, 0.0
    %v244 = vmax.f32 %v239, 0.0
    %v245 = vadd.f32 %v241, %v242
    %v246 = vadd.f32 %v243, %v244
    %v247 = vld [vmem:[#allocation7] sm:$0xff]
    %v248 = vld [vmem:[#allocation7 + $0x8] sm:$0xff]
    %v249 = vld [vmem:[#allocation7 + $0x10] sm:$0xff]
    %v250 = vld [vmem:[#allocation7 + $0x18] sm:$0xff]
    %v251 = vld [vmem:[#allocation7 + $0x20] sm:$0xff]
    %v252 = vld [vmem:[#allocation7 + $0x28] sm:$0xff]
    %v253 = vld [vmem:[#allocation7 + $0x30] sm:$0xff]
    %v254 = vld [vmem:[#allocation7 + $0x38] sm:$0xff]
    %v255 = vld [vmem:[#allocation7 + $0x40] sm:$0xff]
    %v256 = vld [vmem:[#allocation7 + $0x48] sm:$0xff]
    %v257 = vld [vmem:[#allocation7 + $0x50] sm:$0xff]
    %v258 = vld [vmem:[#allocation7 + $0x58] sm:$0xff]
    %v259 = vld [vmem:[#allocation7 + $0x60] sm:$0xff]
    %v260 = vld [vmem:[#allocation7 + $0x68] sm:$0xff]
    %v261 = vld [vmem:[#allocation7 + $0x70] sm:$0xff]
    %v262 = vld [vmem:[#allocation7 + $0x78] sm:$0xff]
    %v263 = vld [vmem:[%s4] sm:$0x1]
    %v265 = vlaneseq
    %v266 = vshrl.u32 %v265, 7
    %v267 = vsub.s32 0, %v266
    %v268 = vrot.slane %v263, %v267
    %270 = vmatprep.subr.mxu0 0.0
    %271 = vmatpush1.msra.mxu0 %v247
    %272 = vmatprep.subr.mxu0 0.0
    %273 = vmatpush1.msra.mxu0 %v248
    %274 = vmatprep.subr.mxu0 0.0
    %275 = vmatpush1.msra.mxu0 %v249
    %276 = vmatprep.subr.mxu0 0.0
    %277 = vmatpush1.msra.mxu0 %v250
    %278 = vmatprep.subr.mxu0 0.0
    %279 = vmatpush1.msra.mxu0 %v251
    %280 = vmatprep.subr.mxu0 0.0
    %281 = vmatpush1.msra.mxu0 %v252
    %282 = vmatprep.subr.mxu0 0.0
    %283 = vmatpush1.msra.mxu0 %v253
    %284 = vmatprep.subr.mxu0 0.0
    %285 = vmatpush1.msra.mxu0 %v254
    %286 = vmatprep.subr.mxu0 0.0
    %287 = vmatpush1.msra.mxu0 %v255
    %288 = vmatprep.subr.mxu0 0.0
    %289 = vmatpush1.msra.mxu0 %v256
    %290 = vmatprep.subr.mxu0 0.0
    %291 = vmatpush1.msra.mxu0 %v257
    %292 = vmatprep.subr.mxu0 0.0
    %293 = vmatpush1.msra.mxu0 %v258
    %294 = vmatprep.subr.mxu0 0.0
    %295 = vmatpush1.msra.mxu0 %v259
    %296 = vmatprep.subr.mxu0 0.0
    %297 = vmatpush1.msra.mxu0 %v260
    %298 = vmatprep.subr.mxu0 0.0
    %299 = vmatpush1.msra.mxu0 %v261
    %300 = vmatprep.subr.mxu0 0.0
    %301 = vmatpush1.msra.mxu0 %v262
    %302 = vmatprep.subr.mxu0 0.0
    %303 = vmatpush1.msra.mxu0 0.0
    %304 = vmatprep.subr.mxu0 0.0
    %305 = vmatpush1.msra.mxu0 0.0
    %306 = vmatprep.subr.mxu0 0.0
    %307 = vmatpush1.msra.mxu0 0.0
    %308 = vmatprep.subr.mxu0 0.0
    %309 = vmatpush1.msra.mxu0 0.0
    %310 = vmatprep.subr.mxu0 0.0
    %311 = vmatpush1.msra.mxu0 0.0
    %312 = vmatprep.subr.mxu0 0.0
    %313 = vmatpush1.msra.mxu0 0.0
    %314 = vmatprep.subr.mxu0 0.0
    %315 = vmatpush1.msra.mxu0 0.0
    %316 = vmatprep.subr.mxu0 0.0
    %317 = vmatpush1.msra.mxu0 0.0
    %318 = vmatprep.subr.mxu0 0.0
    %319 = vmatpush1.msra.mxu0 0.0
    %320 = vmatprep.subr.mxu0 0.0
    %321 = vmatpush1.msra.mxu0 0.0
    %322 = vmatprep.subr.mxu0 0.0
    %323 = vmatpush1.msra.mxu0 0.0
    %324 = vmatprep.subr.mxu0 0.0
    %325 = vmatpush1.msra.mxu0 0.0
    %326 = vmatprep.subr.mxu0 0.0
    %327 = vmatpush1.msra.mxu0 0.0
    %328 = vmatprep.subr.mxu0 0.0
    %329 = vmatpush1.msra.mxu0 0.0
    %330 = vmatprep.subr.mxu0 0.0
    %331 = vmatpush1.msra.mxu0 0.0
    %332 = vmatprep.subr.mxu0 0.0
    %333 = vmatpush1.msra.mxu0 0.0
    %334 = vmatprep.mubr.f32.mxu0 0.0
    %335 = vmatmul.mubr.f32.gmra.mrb[0].mxu0 %v245
    %v336 = vpop.f32.mrb[0].mxu0
    %v337 = vadd.f32 %v268, %v336
    %v338 = vpop.f32.mrb[0].mxu0
    %339 = vmatprep.mubr.f32.mxu0 0.0
    %340 = vmatmul.mubr.f32.gmra.mrb[0].mxu0 %v246
    %v341 = vpop.f32.mrb[0].mxu0
    %v342 = vadd.f32 %v268, %v341
    %v343 = vpop.f32.mrb[0].mxu0
    %344 = vdwg.mxu0
    %v345 = vmax.f32 %v337, 0.0
    %v346 = vmax.f32 %v342, 0.0
    %v347 = vld [vmem:[#allocation8] sm:$0xff]
    %v348 = vld [vmem:[#allocation8 + $0x8] sm:$0xff]
    %v349 = vld [vmem:[#allocation8 + $0x10] sm:$0xff]
    %v350 = vld [vmem:[#allocation8 + $0x18] sm:$0xff]
    %v351 = vld [vmem:[#allocation8 + $0x20] sm:$0xff]
    %v352 = vld [vmem:[#allocation8 + $0x28] sm:$0xff]
    %v353 = vld [vmem:[#allocation8 + $0x30] sm:$0xff]
    %v354 = vld [vmem:[#allocation8 + $0x38] sm:$0xff]
    %v355 = vld [vmem:[#allocation8 + $0x40] sm:$0xff]
    %v356 = vld [vmem:[#allocation8 + $0x48] sm:$0xff]
    %v357 = vld [vmem:[#allocation8 + $0x50] sm:$0xff]
    %v358 = vld [vmem:[#allocation8 + $0x58] sm:$0xff]
    %v359 = vld [vmem:[#allocation8 + $0x60] sm:$0xff]
    %v360 = vld [vmem:[#allocation8 + $0x68] sm:$0xff]
    %v361 = vld [vmem:[#allocation8 + $0x70] sm:$0xff]
    %v362 = vld [vmem:[#allocation8 + $0x78] sm:$0xff]
    %v363 = vld [vmem:[%s6] sm:$0x1]
    %v365 = vlaneseq
    %v366 = vshrl.u32 %v365, 7
    %v367 = vsub.s32 0, %v366
    %v368 = vrot.slane %v363, %v367
    %370 = vmatprep.subr.mxu0 0.0
    %371 = vmatpush1.msra.mxu0 %v347
    %372 = vmatprep.subr.mxu0 0.0
    %373 = vmatpush1.msra.mxu0 %v348
    %374 = vmatprep.subr.mxu0 0.0
    %375 = vmatpush1.msra.mxu0 %v349
    %376 = vmatprep.subr.mxu0 0.0
    %377 = vmatpush1.msra.mxu0 %v350
    %378 = vmatprep.subr.mxu0 0.0
    %379 = vmatpush1.msra.mxu0 %v351
    %380 = vmatprep.subr.mxu0 0.0
    %381 = vmatpush1.msra.mxu0 %v352
    %382 = vmatprep.subr.mxu0 0.0
    %383 = vmatpush1.msra.mxu0 %v353
    %384 = vmatprep.subr.mxu0 0.0
    %385 = vmatpush1.msra.mxu0 %v354
    %386 = vmatprep.subr.mxu0 0.0
    %387 = vmatpush1.msra.mxu0 %v355
    %388 = vmatprep.subr.mxu0 0.0
    %389 = vmatpush1.msra.mxu0 %v356
    %390 = vmatprep.subr.mxu0 0.0
    %391 = vmatpush1.msra.mxu0 %v357
    %392 = vmatprep.subr.mxu0 0.0
    %393 = vmatpush1.msra.mxu0 %v358
    %394 = vmatprep.subr.mxu0 0.0
    %395 = vmatpush1.msra.mxu0 %v359
    %396 = vmatprep.subr.mxu0 0.0
    %397 = vmatpush1.msra.mxu0 %v360
    %398 = vmatprep.subr.mxu0 0.0
    %399 = vmatpush1.msra.mxu0 %v361
    %400 = vmatprep.subr.mxu0 0.0
    %401 = vmatpush1.msra.mxu0 %v362
    %402 = vmatprep.subr.mxu0 0.0
    %403 = vmatpush1.msra.mxu0 0.0
    %404 = vmatprep.subr.mxu0 0.0
    %405 = vmatpush1.msra.mxu0 0.0
    %406 = vmatprep.subr.mxu0 0.0
    %407 = vmatpush1.msra.mxu0 0.0
    %408 = vmatprep.subr.mxu0 0.0
    %409 = vmatpush1.msra.mxu0 0.0
    %410 = vmatprep.subr.mxu0 0.0
    %411 = vmatpush1.msra.mxu0 0.0
    %412 = vmatprep.subr.mxu0 0.0
    %413 = vmatpush1.msra.mxu0 0.0
    %414 = vmatprep.subr.mxu0 0.0
    %415 = vmatpush1.msra.mxu0 0.0
    %416 = vmatprep.subr.mxu0 0.0
    %417 = vmatpush1.msra.mxu0 0.0
    %418 = vmatprep.subr.mxu0 0.0
    %419 = vmatpush1.msra.mxu0 0.0
    %420 = vmatprep.subr.mxu0 0.0
    %421 = vmatpush1.msra.mxu0 0.0
    %422 = vmatprep.subr.mxu0 0.0
    %423 = vmatpush1.msra.mxu0 0.0
    %424 = vmatprep.subr.mxu0 0.0
    %425 = vmatpush1.msra.mxu0 0.0
    %426 = vmatprep.subr.mxu0 0.0
    %427 = vmatpush1.msra.mxu0 0.0
    %428 = vmatprep.subr.mxu0 0.0
    %429 = vmatpush1.msra.mxu0 0.0
    %430 = vmatprep.subr.mxu0 0.0
    %431 = vmatpush1.msra.mxu0 0.0
    %432 = vmatprep.subr.mxu0 0.0
    %433 = vmatpush1.msra.mxu0 0.0
    %434 = vmatprep.mubr.f32.mxu0 0.0
    %435 = vmatmul.mubr.f32.gmra.mrb[0].mxu0 %v345
    %v436 = vpop.f32.mrb[0].mxu0
    %v437 = vadd.f32 %v368, %v436
    %v438 = vpop.f32.mrb[0].mxu0
    %439 = vmatprep.mubr.f32.mxu0 0.0
    %440 = vmatmul.mubr.f32.gmra.mrb[0].mxu0 %v346
    %v441 = vpop.f32.mrb[0].mxu0
    %v442 = vadd.f32 %v368, %v441
    %v443 = vpop.f32.mrb[0].mxu0
    %444 = vdwg.mxu0
    %v445 = vmax.f32 %v437, 0.0
    %v446 = vmax.f32 %v442, 0.0
    %v447 = vld [vmem:[#allocation10] sm:$0xff]
    %v448 = vld [vmem:[#allocation10 + $0x8] sm:$0xff]
    %v449 = vld [vmem:[#allocation10 + $0x10] sm:$0xff]
    %v450 = vld [vmem:[#allocation10 + $0x18] sm:$0xff]
    %v451 = vld [vmem:[#allocation10 + $0x20] sm:$0xff]
    %v452 = vld [vmem:[#allocation10 + $0x28] sm:$0xff]
    %v453 = vld [vmem:[#allocation10 + $0x30] sm:$0xff]
    %v454 = vld [vmem:[#allocation10 + $0x38] sm:$0xff]
    %v455 = vld [vmem:[#allocation10 + $0x40] sm:$0xff]
    %v456 = vld [vmem:[#allocation10 + $0x48] sm:$0xff]
    %v457 = vld [vmem:[#allocation10 + $0x50] sm:$0xff]
    %v458 = vld [vmem:[#allocation10 + $0x58] sm:$0xff]
    %v459 = vld [vmem:[#allocation10 + $0x60] sm:$0xff]
    %v460 = vld [vmem:[#allocation10 + $0x68] sm:$0xff]
    %v461 = vld [vmem:[#allocation10 + $0x70] sm:$0xff]
    %v462 = vld [vmem:[#allocation10 + $0x78] sm:$0xff]
    %v463 = vld [vmem:[%s8] sm:$0x1]
    %v465 = vlaneseq
    %v466 = vshrl.u32 %v465, 7
    %v467 = vsub.s32 0, %v466
    %v468 = vrot.slane %v463, %v467
    %470 = vmatprep.subr.mxu0 0.0
    %471 = vmatpush1.msra.mxu0 %v447
    %472 = vmatprep.subr.mxu0 0.0
    %473 = vmatpush1.msra.mxu0 %v448
    %474 = vmatprep.subr.mxu0 0.0
    %475 = vmatpush1.msra.mxu0 %v449
    %476 = vmatprep.subr.mxu0 0.0
    %477 = vmatpush1.msra.mxu0 %v450
    %478 = vmatprep.subr.mxu0 0.0
    %479 = vmatpush1.msra.mxu0 %v451
    %480 = vmatprep.subr.mxu0 0.0
    %481 = vmatpush1.msra.mxu0 %v452
    %482 = vmatprep.subr.mxu0 0.0
    %483 = vmatpush1.msra.mxu0 %v453
    %484 = vmatprep.subr.mxu0 0.0
    %485 = vmatpush1.msra.mxu0 %v454
    %486 = vmatprep.subr.mxu0 0.0
    %487 = vmatpush1.msra.mxu0 %v455
    %488 = vmatprep.subr.mxu0 0.0
    %489 = vmatpush1.msra.mxu0 %v456
    %490 = vmatprep.subr.mxu0 0.0
    %491 = vmatpush1.msra.mxu0 %v457
    %492 = vmatprep.subr.mxu0 0.0
    %493 = vmatpush1.msra.mxu0 %v458
    %494 = vmatprep.subr.mxu0 0.0
    %495 = vmatpush1.msra.mxu0 %v459
    %496 = vmatprep.subr.mxu0 0.0
    %497 = vmatpush1.msra.mxu0 %v460
    %498 = vmatprep.subr.mxu0 0.0
    %499 = vmatpush1.msra.mxu0 %v461
    %500 = vmatprep.subr.mxu0 0.0
    %501 = vmatpush1.msra.mxu0 %v462
    %502 = vmatprep.subr.mxu0 0.0
    %503 = vmatpush1.msra.mxu0 0.0
    %504 = vmatprep.subr.mxu0 0.0
    %505 = vmatpush1.msra.mxu0 0.0
    %506 = vmatprep.subr.mxu0 0.0
    %507 = vmatpush1.msra.mxu0 0.0
    %508 = vmatprep.subr.mxu0 0.0
    %509 = vmatpush1.msra.mxu0 0.0
    %510 = vmatprep.subr.mxu0 0.0
    %511 = vmatpush1.msra.mxu0 0.0
    %512 = vmatprep.subr.mxu0 0.0
    %513 = vmatpush1.msra.mxu0 0.0
    %514 = vmatprep.subr.mxu0 0.0
    %515 = vmatpush1.msra.mxu0 0.0
    %516 = vmatprep.subr.mxu0 0.0
    %517 = vmatpush1.msra.mxu0 0.0
    %518 = vmatprep.subr.mxu0 0.0
    %519 = vmatpush1.msra.mxu0 0.0
    %520 = vmatprep.subr.mxu0 0.0
    %521 = vmatpush1.msra.mxu0 0.0
    %522 = vmatprep.subr.mxu0 0.0
    %523 = vmatpush1.msra.mxu0 0.0
    %524 = vmatprep.subr.mxu0 0.0
    %525 = vmatpush1.msra.mxu0 0.0
    %526 = vmatprep.subr.mxu0 0.0
    %527 = vmatpush1.msra.mxu0 0.0
    %528 = vmatprep.subr.mxu0 0.0
    %529 = vmatpush1.msra.mxu0 0.0
    %530 = vmatprep.subr.mxu0 0.0
    %531 = vmatpush1.msra.mxu0 0.0
    %532 = vmatprep.subr.mxu0 0.0
    %533 = vmatpush1.msra.mxu0 0.0
    %534 = vmatprep.mubr.f32.mxu0 0.0
    %535 = vmatmul.mubr.f32.gmra.mrb[0].mxu0 %v445
    %v536 = vpop.f32.mrb[0].mxu0
    %v537 = vadd.f32 %v468, %v536
    %v538 = vpop.f32.mrb[0].mxu0
    %539 = vmatprep.mubr.f32.mxu0 0.0
    %540 = vmatmul.mubr.f32.gmra.mrb[0].mxu0 %v446
    %v541 = vpop.f32.mrb[0].mxu0
    %v542 = vadd.f32 %v468, %v541
    %v543 = vpop.f32.mrb[0].mxu0
    %544 = vdwg.mxu0
    %545 = vst [vmem:[#allocation11] sm:$0xff] %v537
    %546 = vst [vmem:[#allocation11 + $0x8] sm:$0xff] %v542
    // Predicated region
    $region58: #{tpu_custom_call.1} parent=1 // pred_check
      _
    $region59: #{tpu_custom_call.1} parent=1 // pred_check_branch
      %548 = sbr.rel (0) target = $region61
    $region60: #{tpu_custom_call.1} parent=1 // pred_region
      %s550 = ssub.s32 256, 256
      %551 = vsyncadd [#allocation4], %s550
      %s552 = sshll.u32 [#allocation11], 4
      %s553 = int_to_ptr.vmem [resolvable:$true] %s552
      %558 = dma.vmem_to_hbm [thread:$0]  %s553, 256, %s9, [#allocation4], 128, 128, 8
    $region61: #{tpu_custom_call.1} parent=1 // pred_fallthru
      _
    // Predicated region
    $region62: #{tpu_custom_call.1} parent=1 // pred_check
      _
    $region63: #{tpu_custom_call.1} parent=1 // pred_check_branch
      %560 = sbr.rel (0) target = $region65
    $region64: #{tpu_custom_call.1} parent=1 // pred_region
      %561 = dma.done [#allocation4], 256
    $region65: #{tpu_custom_call.1} parent=1 // pred_fallthru
      _
    %562 = vsyncpa [#allocation3], 1
    %563 = vsyncpa [#allocation6], 1
    %564 = vsyncpa [#allocation9], 1
    %565 = vsyncpa [#allocation4], 1

</llo_original>
